<compile_context>
chip_gen: v5e
topology: v5e:2x2
jax: 0.10.0
libtpu: 0.0.40
codegen_flags: <defaults>
</compile_context>

<pallas_src>
import jax
import jax.numpy as jnp
from jax.experimental import pallas as pl
from jax.experimental.pallas import tpu as pltpu


def _round_up(n, m):
    return ((n + m - 1) // m) * m


def _sigmoid(z):
    # One EUP transcendental per element (tanh), exact to f32 precision.
    return 0.5 + 0.5 * jnp.tanh(0.5 * z)


def pid_ann_kernel(x_ref, w1_ref, b1_ref, w2_ref, b2_ref, w3_ref, b3_ref, o_ref):
    # x_ref : (rows, 128)   packed: row r, lane 4*c+f  <->  x[32*r + c, f]
    # w*_ref: block-diagonal packed weights (see _pack_params)
    # b*_ref: (1, pack*out) tiled biases
    # o_ref : (rows, 96)    packed: row r, lane 3*c+o  <->  out[32*r + c, o]
    x = x_ref[...].astype(jnp.bfloat16)

    z1 = jnp.dot(x, w1_ref[...], preferred_element_type=jnp.float32) + b1_ref[...]
    h1 = _sigmoid(z1)                                                  # (rows, 448) f32

    z2 = jnp.dot(h1.astype(jnp.bfloat16), w2_ref[...],
                 preferred_element_type=jnp.float32) + b2_ref[...]
    h2 = _sigmoid(z2)                                                  # (rows, 320) f32

    # Final 10->3 layer kept in f32 for accuracy (tiny fraction of MXU work).
    out = jnp.dot(h2, w3_ref[...], preferred_element_type=jnp.float32) + b3_ref[...]
    o_ref[...] = out.astype(o_ref.dtype)                               # (rows, 96)


def _pack_params(params, pack):
    """Block-diagonal packing so `pack` batch rows share one 128-lane row."""
    eye = jnp.eye(pack, dtype=jnp.float32)
    w1p = jnp.kron(eye, params["w1"].T).astype(jnp.bfloat16)   # (pack*in,  pack*h1)
    w2p = jnp.kron(eye, params["w2"].T).astype(jnp.bfloat16)   # (pack*h1,  pack*h2)
    w3p = jnp.kron(eye, params["w3"].T).astype(jnp.float32)    # (pack*h2,  pack*out)
    b1p = jnp.tile(params["b1"].reshape(1, -1), (1, pack)).astype(jnp.float32)
    b2p = jnp.tile(params["b2"].reshape(1, -1), (1, pack)).astype(jnp.float32)
    b3p = jnp.tile(params["b3"].reshape(1, -1), (1, pack)).astype(jnp.float32)
    return w1p, b1p, w2p, b2p, w3p, b3p


def pid_ann_forward(x, params, block_b=32768):
    """x: (B, input_size) f32. params: PyTorch-native w (out,in), b (out,1)."""
    B, in_size = x.shape
    h1 = params["w1"].shape[0]
    h2 = params["w2"].shape[0]
    out_size = params["w3"].shape[0]

    # Packing factor: batch rows per 128-lane vector row.
    assert 128 % in_size == 0, "input_size must divide 128 (PID_ANN uses 4)"
    pack = 128 // in_size                     # 32 for input_size=4

    # Clamp the batch tile to a multiple of pack*8 (8 sublanes of packed rows),
    # never trusting the caller to pass a tiling-compatible value.
    granule = pack * 8                        # 256 rows
    block_b = max(granule, (block_b // granule) * granule)
    tb = min(block_b, _round_up(B, granule))
    b_pad = _round_up(B, tb)
    if b_pad != B:
        # Pad only the ragged tail block; padded rows are sliced off below.
        x = jnp.pad(x, ((0, b_pad - B), (0, 0)))

    # Free, contiguous reshape (row-major view change, no HBM transpose pass).
    xp = x.reshape(b_pad // pack, pack * in_size)           # (b_pad/32, 128)

    w1p, b1p, w2p, b2p, w3p, b3p = _pack_params(params, pack)

    rows = tb // pack
    grid = (b_pad // tb,)

    def resident(a):
        # Constant-index blocks: fetched once, stay resident in VMEM.
        return pl.BlockSpec(a.shape, lambda i: (0, 0))

    cost = pl.CostEstimate(
        flops=2 * (in_size * h1 + h1 * h2 + h2 * out_size) * b_pad,   # ~452*B useful
        transcendentals=(h1 + h2) * b_pad,                            # ~24*B
        bytes_accessed=(in_size + out_size) * 4 * b_pad,              # ~28*B
    )

    outp = pl.pallas_call(
        pid_ann_kernel,
        out_shape=jax.ShapeDtypeStruct((b_pad // pack, pack * out_size), jnp.float32),
        grid=grid,
        in_specs=[
            pl.BlockSpec((rows, pack * in_size), lambda i: (i, 0)),   # streamed input
            resident(w1p), resident(b1p),
            resident(w2p), resident(b2p),
            resident(w3p), resident(b3p),
        ],
        out_specs=pl.BlockSpec((rows, pack * out_size), lambda i: (i, 0)),
        compiler_params=pltpu.CompilerParams(
            dimension_semantics=("parallel",),        # batch axis: shardable on v7x TCs
            vmem_limit_bytes=48 * 1024 * 1024,        # fits v7x 64 MiB, covers v5e default
        ),
        cost_estimate=cost,
    )(xp, w1p, b1p, w2p, b2p, w3p, b3p)

    # Free, contiguous reshape back to batch-major; drop the padded tail.
    return outp.reshape(b_pad, out_size)[:B]


def init_params(key, input_size=4, hidden1=14, hidden2=10, output_size=3):
    """nn.Linear-style init U[-1/sqrt(fan_in), 1/sqrt(fan_in)]; w (out,in), b (out,1)."""
    ks = jax.random.split(key, 6)

    def linear(kw, kb, fan_in, fan_out):
        bound = 1.0 / jnp.sqrt(fan_in)
        w = jax.random.uniform(kw, (fan_out, fan_in), jnp.float32, -bound, bound)
        b = jax.random.uniform(kb, (fan_out, 1), jnp.float32, -bound, bound)
        return w, b

    w1, b1 = linear(ks[0], ks[1], input_size, hidden1)
    w2, b2 = linear(ks[2], ks[3], hidden1, hidden2)
    w3, b3 = linear(ks[4], ks[5], hidden2, output_size)
    return {"w1": w1, "b1": b1, "w2": w2, "b2": b2, "w3": w3, "b3": b3}


def reference_forward(x, p):
    h1 = jax.nn.sigmoid(x @ p["w1"].T + p["b1"].T)
    h2 = jax.nn.sigmoid(h1 @ p["w2"].T + p["b2"].T)
    return h2 @ p["w3"].T + p["b3"].T


if __name__ == "__main__":
    key = jax.random.PRNGKey(0)
    kp, kx1, kx2 = jax.random.split(key, 3)

    input_size = 4
    params = init_params(kp, input_size=input_size, hidden1=14, hidden2=10, output_size=3)

    # Small shape consistent with the module (PID controller batch of states).
    B = 8
    x = jax.random.normal(kx1, (B, input_size), jnp.float32)
    out = jax.block_until_ready(pid_ann_forward(x, params))
    ref = reference_forward(x, params)
    assert out.shape == (B, 3)
    # bf16 matmuls in layers 1-2 -> ~1e-2 absolute tolerance is ample.
    assert jnp.allclose(out, ref, atol=3e-2, rtol=3e-2), "mismatch vs JAX reference"

    # Also exercise a multi-step grid with a ragged (padded) tail block.
    B2 = 300
    x2 = jax.random.normal(kx2, (B2, input_size), jnp.float32)
    out2 = jax.block_until_ready(pid_ann_forward(x2, params, block_b=256))
    ref2 = reference_forward(x2, params)
    assert out2.shape == (B2, 3)
    assert jnp.allclose(out2, ref2, atol=3e-2, rtol=3e-2), "mismatch (tiled/padded case)"

    print("KERNEL_OK")
</pallas_src>

<mosaic_0001>
module attributes {stable_mosaic.version = 11 : i64} {
  func.func @pid_ann_kernel(%arg0: i32, %arg1: memref<8x128xf32, #tpu.memory_space<vmem>>, %arg2: memref<128x448xbf16, #tpu.memory_space<vmem>>, %arg3: memref<1x448xf32, #tpu.memory_space<vmem>>, %arg4: memref<448x320xbf16, #tpu.memory_space<vmem>>, %arg5: memref<1x320xf32, #tpu.memory_space<vmem>>, %arg6: memref<320x96xf32, #tpu.memory_space<vmem>>, %arg7: memref<1x96xf32, #tpu.memory_space<vmem>>, %arg8: memref<8x96xf32, #tpu.memory_space<vmem>>) attributes {dimension_semantics = [#tpu.dimension_semantics<parallel>], iteration_bounds = array<i64: 1>, scalar_prefetch = 0 : i64, scratch_operands = 0 : i64, tpu.core_type = #tpu.core_type<tc>, window_params = [{transform_indices = @transform_0, window_bounds = array<i64: 8, 128>}, {pipeline_mode = #tpu.pipeline_mode<synchronous>, transform_indices = @transform_1, window_bounds = array<i64: 128, 448>}, {pipeline_mode = #tpu.pipeline_mode<synchronous>, transform_indices = @transform_2, window_bounds = array<i64: 1, 448>}, {pipeline_mode = #tpu.pipeline_mode<synchronous>, transform_indices = @transform_3, window_bounds = array<i64: 448, 320>}, {pipeline_mode = #tpu.pipeline_mode<synchronous>, transform_indices = @transform_4, window_bounds = array<i64: 1, 320>}, {pipeline_mode = #tpu.pipeline_mode<synchronous>, transform_indices = @transform_5, window_bounds = array<i64: 320, 96>}, {pipeline_mode = #tpu.pipeline_mode<synchronous>, transform_indices = @transform_6, window_bounds = array<i64: 1, 96>}, {transform_indices = @transform_7, window_bounds = array<i64: 8, 96>}]} {
    %c0 = arith.constant 0 : index
    %c0_0 = arith.constant 0 : index
    %0 = vector.load %arg1[%c0, %c0_0] : memref<8x128xf32, #tpu.memory_space<vmem>>, vector<8x128xf32>
    %1 = arith.truncf %0 : vector<8x128xf32> to vector<8x128xbf16>
    %c0_1 = arith.constant 0 : index
    %c0_2 = arith.constant 0 : index
    %2 = vector.load %arg2[%c0_1, %c0_2] : memref<128x448xbf16, #tpu.memory_space<vmem>>, vector<128x448xbf16>
    %cst = arith.constant dense<0.000000e+00> : vector<8x448xf32>
    %3 = tpu.matmul %1, %2, %cst {dimension_numbers = #tpu.dot_dimension_numbers<[1], [0], [0], [1], [0, 0, 1, 1], [], []>} : vector<8x128xbf16>, vector<128x448xbf16>, vector<8x448xf32> -> vector<8x448xf32>
    %c0_3 = arith.constant 0 : index
    %c0_4 = arith.constant 0 : index
    %4 = vector.load %arg3[%c0_3, %c0_4] : memref<1x448xf32, #tpu.memory_space<vmem>>, vector<1x448xf32>
    %5 = vector.broadcast %4 : vector<1x448xf32> to vector<8x448xf32>
    %6 = arith.addf %3, %5 : vector<8x448xf32>
    %cst_5 = arith.constant 5.000000e-01 : f32
    %7 = vector.broadcast %cst_5 : f32 to vector<8x448xf32>
    %8 = arith.mulf %7, %6 : vector<8x448xf32>
    %9 = math.tanh %8 : vector<8x448xf32>
    %cst_6 = arith.constant 5.000000e-01 : f32
    %10 = vector.broadcast %cst_6 : f32 to vector<8x448xf32>
    %11 = arith.mulf %10, %9 : vector<8x448xf32>
    %cst_7 = arith.constant 5.000000e-01 : f32
    %12 = vector.broadcast %cst_7 : f32 to vector<8x448xf32>
    %13 = arith.addf %12, %11 : vector<8x448xf32>
    %14 = arith.truncf %13 : vector<8x448xf32> to vector<8x448xbf16>
    %c0_8 = arith.constant 0 : index
    %c0_9 = arith.constant 0 : index
    %15 = vector.load %arg4[%c0_8, %c0_9] : memref<448x320xbf16, #tpu.memory_space<vmem>>, vector<448x320xbf16>
    %cst_10 = arith.constant dense<0.000000e+00> : vector<8x320xf32>
    %16 = tpu.matmul %14, %15, %cst_10 {dimension_numbers = #tpu.dot_dimension_numbers<[1], [0], [0], [1], [0, 0, 1, 1], [], []>} : vector<8x448xbf16>, vector<448x320xbf16>, vector<8x320xf32> -> vector<8x320xf32>
    %c0_11 = arith.constant 0 : index
    %c0_12 = arith.constant 0 : index
    %17 = vector.load %arg5[%c0_11, %c0_12] : memref<1x320xf32, #tpu.memory_space<vmem>>, vector<1x320xf32>
    %18 = vector.broadcast %17 : vector<1x320xf32> to vector<8x320xf32>
    %19 = arith.addf %16, %18 : vector<8x320xf32>
    %cst_13 = arith.constant 5.000000e-01 : f32
    %20 = vector.broadcast %cst_13 : f32 to vector<8x320xf32>
    %21 = arith.mulf %20, %19 : vector<8x320xf32>
    %22 = math.tanh %21 : vector<8x320xf32>
    %cst_14 = arith.constant 5.000000e-01 : f32
    %23 = vector.broadcast %cst_14 : f32 to vector<8x320xf32>
    %24 = arith.mulf %23, %22 : vector<8x320xf32>
    %cst_15 = arith.constant 5.000000e-01 : f32
    %25 = vector.broadcast %cst_15 : f32 to vector<8x320xf32>
    %26 = arith.addf %25, %24 : vector<8x320xf32>
    %c0_16 = arith.constant 0 : index
    %c0_17 = arith.constant 0 : index
    %27 = vector.load %arg6[%c0_16, %c0_17] : memref<320x96xf32, #tpu.memory_space<vmem>>, vector<320x96xf32>
    %cst_18 = arith.constant dense<0.000000e+00> : vector<8x96xf32>
    %28 = tpu.matmul %26, %27, %cst_18 {dimension_numbers = #tpu.dot_dimension_numbers<[1], [0], [0], [1], [0, 0, 1, 1], [], []>} : vector<8x320xf32>, vector<320x96xf32>, vector<8x96xf32> -> vector<8x96xf32>
    %c0_19 = arith.constant 0 : index
    %c0_20 = arith.constant 0 : index
    %29 = vector.load %arg7[%c0_19, %c0_20] : memref<1x96xf32, #tpu.memory_space<vmem>>, vector<1x96xf32>
    %30 = vector.broadcast %29 : vector<1x96xf32> to vector<8x96xf32>
    %31 = arith.addf %28, %30 : vector<8x96xf32>
    %c0_21 = arith.constant 0 : index
    %c0_22 = arith.constant 0 : index
    %32 = vector.load %arg8[%c0_21, %c0_22] : memref<8x96xf32, #tpu.memory_space<vmem>>, vector<8x96xf32>
    tpu.vector_store %arg8[%c0_21, %c0_22], %31 {strides = array<i32>} : memref<8x96xf32, #tpu.memory_space<vmem>>, vector<8x96xf32>,
    return
  }
  func.func @transform_0(%arg0: i32) -> (i32, i32) {
    %c0_i32 = arith.constant 0 : i32
    %c0_i32_0 = arith.constant 0 : i32
    return %arg0, %c0_i32 : i32, i32
  }
  func.func @transform_1(%arg0: i32) -> (i32, i32) {
    %c0_i32 = arith.constant 0 : i32
    %c0_i32_0 = arith.constant 0 : i32
    %c0_i32_1 = arith.constant 0 : i32
    return %c0_i32, %c0_i32_0 : i32, i32
  }
  func.func @transform_2(%arg0: i32) -> (i32, i32) {
    %c0_i32 = arith.constant 0 : i32
    %c0_i32_0 = arith.constant 0 : i32
    %c0_i32_1 = arith.constant 0 : i32
    return %c0_i32, %c0_i32_0 : i32, i32
  }
  func.func @transform_3(%arg0: i32) -> (i32, i32) {
    %c0_i32 = arith.constant 0 : i32
    %c0_i32_0 = arith.constant 0 : i32
    %c0_i32_1 = arith.constant 0 : i32
    return %c0_i32, %c0_i32_0 : i32, i32
  }
  func.func @transform_4(%arg0: i32) -> (i32, i32) {
    %c0_i32 = arith.constant 0 : i32
    %c0_i32_0 = arith.constant 0 : i32
    %c0_i32_1 = arith.constant 0 : i32
    return %c0_i32, %c0_i32_0 : i32, i32
  }
  func.func @transform_5(%arg0: i32) -> (i32, i32) {
    %c0_i32 = arith.constant 0 : i32
    %c0_i32_0 = arith.constant 0 : i32
    %c0_i32_1 = arith.constant 0 : i32
    return %c0_i32, %c0_i32_0 : i32, i32
  }
  func.func @transform_6(%arg0: i32) -> (i32, i32) {
    %c0_i32 = arith.constant 0 : i32
    %c0_i32_0 = arith.constant 0 : i32
    %c0_i32_1 = arith.constant 0 : i32
    return %c0_i32, %c0_i32_0 : i32, i32
  }
  func.func @transform_7(%arg0: i32) -> (i32, i32) {
    %c0_i32 = arith.constant 0 : i32
    %c0_i32_0 = arith.constant 0 : i32
    return %arg0, %c0_i32 : i32, i32
  }
}

</mosaic_0001>

<llo_original>
// kernel: tpu_custom_call.1
$region0: #{tpu_custom_call.1}
  #allocation0 [shape = 'u32[]', space=smem, size = 0x4, offset = 0x4, fixed_abs, tag = 'smem constant byte address 0x4 - core index']
  #allocation1 [shape = 'u32[72,128]{1,0:T(1,128)}', space=vmem, size = 0x9000, scoped, tag = 'internal scratch']
  %s0 = inlined_call_operand.vmem [shape: f32[8,128], index: 0, kind: input, shape index: {}]
  %s1 = inlined_call_operand.vmem [shape: bf16[128,448], index: 1, kind: input, shape index: {}]
  %s2 = inlined_call_operand.vmem [shape: f32[1,448], index: 2, kind: input, shape index: {}]
  %s3 = inlined_call_operand.vmem [shape: bf16[448,320], index: 3, kind: input, shape index: {}]
  %s4 = inlined_call_operand.vmem [shape: f32[1,320], index: 4, kind: input, shape index: {}]
  %s5 = inlined_call_operand.vmem [shape: f32[320,96], index: 5, kind: input, shape index: {}]
  %s6 = inlined_call_operand.vmem [shape: f32[1,96], index: 6, kind: input, shape index: {}]
  %s7 = inlined_call_operand.hbm [shape: f32[8,96], index: 7, kind: output, shape index: {}]
  %s8 = sld [smem:[#allocation0]]
  $region38: #{tpu_custom_call.1} parent=0
    _
  %s10 = ssub.s32 1, %s8
  %s11 = scalar_select 0, %s10, %s8
  $region1: #{tpu_custom_call.1} parent=0
    #allocation2 [shape = 'u8[4096]{0}', space=vmem, size = 0x1000, scoped, tag = 'output window, operand 0, single buffered']
    #allocation3 [shape = 's32[1]{0}', space=sflag, size = 0x4, scoped, tag = 'scoped memory for tpu_custom_call.1']
    %12 = vsyncpa [#allocation3], 0
    // Predicated region
    $region2: #{tpu_custom_call.1} parent=1 // pred_check
      _
    $region3: #{tpu_custom_call.1} parent=1 // pred_check_branch
      %14 = sbr.rel (0) target = $region5
    $region4: #{tpu_custom_call.1} parent=1 // pred_region
      _
    $region5: #{tpu_custom_call.1} parent=1 // pred_fallthru
      _
    // Predicated region
    $region6: #{tpu_custom_call.1} parent=1 // pred_check
      _
    $region7: #{tpu_custom_call.1} parent=1 // pred_check_branch
      %16 = sbr.rel (0) target = $region9
    $region8: #{tpu_custom_call.1} parent=1 // pred_region
      _
    $region9: #{tpu_custom_call.1} parent=1 // pred_fallthru
      _
    // Predicated region
    $region10: #{tpu_custom_call.1} parent=1 // pred_check
      _
    $region11: #{tpu_custom_call.1} parent=1 // pred_check_branch
      %18 = sbr.rel (0) target = $region13
    $region12: #{tpu_custom_call.1} parent=1 // pred_region
      _
    $region13: #{tpu_custom_call.1} parent=1 // pred_fallthru
      _
    // Predicated region
    $region14: #{tpu_custom_call.1} parent=1 // pred_check
      _
    $region15: #{tpu_custom_call.1} parent=1 // pred_check_branch
      %20 = sbr.rel (0) target = $region17
    $region16: #{tpu_custom_call.1} parent=1 // pred_region
      _
    $region17: #{tpu_custom_call.1} parent=1 // pred_fallthru
      _
    // Predicated region
    $region18: #{tpu_custom_call.1} parent=1 // pred_check
      _
    $region19: #{tpu_custom_call.1} parent=1 // pred_check_branch
      %22 = sbr.rel (0) target = $region21
    $region20: #{tpu_custom_call.1} parent=1 // pred_region
      _
    $region21: #{tpu_custom_call.1} parent=1 // pred_fallthru
      _
    // Predicated region
    $region22: #{tpu_custom_call.1} parent=1 // pred_check
      _
    $region23: #{tpu_custom_call.1} parent=1 // pred_check_branch
      %24 = sbr.rel (0) target = $region25
    $region24: #{tpu_custom_call.1} parent=1 // pred_region
      _
    $region25: #{tpu_custom_call.1} parent=1 // pred_fallthru
      _
    // Predicated region
    $region26: #{tpu_custom_call.1} parent=1 // pred_check
      _
    $region27: #{tpu_custom_call.1} parent=1 // pred_check_branch
      %26 = sbr.rel (0) target = $region29
    $region28: #{tpu_custom_call.1} parent=1 // pred_region
      _
    $region29: #{tpu_custom_call.1} parent=1 // pred_fallthru
      _
    %v28 = vld [vmem:[%s0] sm:$0xff]
    %v29 = vpack.c.bf16 %v28, %v28
    %v30 = vld [vmem:[%s1] sm:$0xff]
    %v31 = vld [vmem:[%s1 + $0x8] sm:$0xff]
    %v32 = vld [vmem:[%s1 + $0x10] sm:$0xff]
    %v33 = vld [vmem:[%s1 + $0x18] sm:$0xff]
    %v34 = vld [vmem:[%s1 + $0x20] sm:$0xff]
    %v35 = vld [vmem:[%s1 + $0x28] sm:$0xff]
    %v36 = vld [vmem:[%s1 + $0x30] sm:$0xff]
    %v37 = vld [vmem:[%s1 + $0x38] sm:$0xff]
    %v38 = vld [vmem:[%s1 + $0x40] sm:$0xff]
    %v39 = vld [vmem:[%s1 + $0x48] sm:$0xff]
    %v40 = vld [vmem:[%s1 + $0x50] sm:$0xff]
    %v41 = vld [vmem:[%s1 + $0x58] sm:$0xff]
    %v42 = vld [vmem:[%s1 + $0x60] sm:$0xff]
    %v43 = vld [vmem:[%s1 + $0x68] sm:$0xff]
    %v44 = vld [vmem:[%s1 + $0x70] sm:$0xff]
    %v45 = vld [vmem:[%s1 + $0x78] sm:$0xff]
    %v46 = vld [vmem:[%s1 + $0x80] sm:$0xff]
    %v47 = vld [vmem:[%s1 + $0x88] sm:$0xff]
    %v48 = vld [vmem:[%s1 + $0x90] sm:$0xff]
    %v49 = vld [vmem:[%s1 + $0x98] sm:$0xff]
    %v50 = vld [vmem:[%s1 + $0xa0] sm:$0xff]
    %v51 = vld [vmem:[%s1 + $0xa8] sm:$0xff]
    %v52 = vld [vmem:[%s1 + $0xb0] sm:$0xff]
    %v53 = vld [vmem:[%s1 + $0xb8] sm:$0xff]
    %v54 = vld [vmem:[%s1 + $0xc0] sm:$0xff]
    %v55 = vld [vmem:[%s1 + $0xc8] sm:$0xff]
    %v56 = vld [vmem:[%s1 + $0xd0] sm:$0xff]
    %v57 = vld [vmem:[%s1 + $0xd8] sm:$0xff]
    %v58 = vld [vmem:[%s1 + $0xe0] sm:$0xff]
    %v59 = vld [vmem:[%s1 + $0xe8] sm:$0xff]
    %v60 = vld [vmem:[%s1 + $0xf0] sm:$0xff]
    %v61 = vld [vmem:[%s1 + $0xf8] sm:$0xff]
    %v62 = vld [vmem:[%s2] sm:$0xf]
    %v64 = vperm.slane %v62, 0
    %v65 = vperm.slane %v62, 1
    %v66 = vperm.slane %v62, 2
    %v67 = vperm.slane %v62, 3
    %v104 = vunpack.c.l.b16 %v30
    %v105 = vunpack.c.h.b16 %v30
    %v106 = vunpack.c.l.b16 %v31
    %v107 = vunpack.c.h.b16 %v31
    %v108 = vunpack.c.l.b16 %v32
    %v109 = vunpack.c.h.b16 %v32
    %v110 = vunpack.c.l.b16 %v33
    %v111 = vunpack.c.h.b16 %v33
    %v112 = vunpack.c.l.b16 %v34
    %v113 = vunpack.c.h.b16 %v34
    %v114 = vunpack.c.l.b16 %v35
    %v115 = vunpack.c.h.b16 %v35
    %v116 = vunpack.c.l.b16 %v36
    %v117 = vunpack.c.h.b16 %v36
    %v118 = vunpack.c.l.b16 %v37
    %v119 = vunpack.c.h.b16 %v37
    %v120 = vunpack.c.l.b16 %v38
    %v121 = vunpack.c.h.b16 %v38
    %v122 = vunpack.c.l.b16 %v39
    %v123 = vunpack.c.h.b16 %v39
    %v124 = vunpack.c.l.b16 %v40
    %v125 = vunpack.c.h.b16 %v40
    %v126 = vunpack.c.l.b16 %v41
    %v127 = vunpack.c.h.b16 %v41
    %v128 = vunpack.c.l.b16 %v42
    %v129 = vunpack.c.h.b16 %v42
    %v130 = vunpack.c.l.b16 %v43
    %v131 = vunpack.c.h.b16 %v43
    %v132 = vunpack.c.l.b16 %v44
    %v133 = vunpack.c.h.b16 %v44
    %v134 = vunpack.c.l.b16 %v45
    %v135 = vunpack.c.h.b16 %v45
    %v136 = vunpack.c.l.b16 %v46
    %v137 = vunpack.c.h.b16 %v46
    %v138 = vunpack.c.l.b16 %v47
    %v139 = vunpack.c.h.b16 %v47
    %v140 = vunpack.c.l.b16 %v48
    %v141 = vunpack.c.h.b16 %v48
    %v142 = vunpack.c.l.b16 %v49
    %v143 = vunpack.c.h.b16 %v49
    %v144 = vunpack.c.l.b16 %v50
    %v145 = vunpack.c.h.b16 %v50
    %v146 = vunpack.c.l.b16 %v51
    %v147 = vunpack.c.h.b16 %v51
    %v148 = vunpack.c.l.b16 %v52
    %v149 = vunpack.c.h.b16 %v52
    %v150 = vunpack.c.l.b16 %v53
    %v151 = vunpack.c.h.b16 %v53
    %v152 = vunpack.c.l.b16 %v54
    %v153 = vunpack.c.h.b16 %v54
    %v154 = vunpack.c.l.b16 %v55
    %v155 = vunpack.c.h.b16 %v55
    %v156 = vunpack.c.l.b16 %v56
    %v157 = vunpack.c.h.b16 %v56
    %v158 = vunpack.c.l.b16 %v57
    %v159 = vunpack.c.h.b16 %v57
    %v160 = vunpack.c.l.b16 %v58
    %v161 = vunpack.c.h.b16 %v58
    %v162 = vunpack.c.l.b16 %v59
    %v163 = vunpack.c.h.b16 %v59
    %v164 = vunpack.c.l.b16 %v60
    %v165 = vunpack.c.h.b16 %v60
    %v166 = vunpack.c.l.b16 %v61
    %v167 = vunpack.c.h.b16 %v61
    %v168 = vpack.c.b16 %v108, %v104
    %v169 = vpack.c.b16 %v109, %v105
    %v170 = vpack.c.b16 %v110, %v106
    %v171 = vpack.c.b16 %v111, %v107
    %v172 = vpack.c.b16 %v116, %v112
    %v173 = vpack.c.b16 %v117, %v113
    %v174 = vpack.c.b16 %v118, %v114
    %v175 = vpack.c.b16 %v119, %v115
    %v176 = vpack.c.b16 %v124, %v120
    %v177 = vpack.c.b16 %v125, %v121
    %v178 = vpack.c.b16 %v126, %v122
    %v179 = vpack.c.b16 %v127, %v123
    %v180 = vpack.c.b16 %v132, %v128
    %v181 = vpack.c.b16 %v133, %v129
    %v182 = vpack.c.b16 %v134, %v130
    %v183 = vpack.c.b16 %v135, %v131
    %v184 = vpack.c.b16 %v140, %v136
    %v185 = vpack.c.b16 %v141, %v137
    %v186 = vpack.c.b16 %v142, %v138
    %v187 = vpack.c.b16 %v143, %v139
    %v188 = vpack.c.b16 %v148, %v144
    %v189 = vpack.c.b16 %v149, %v145
    %v190 = vpack.c.b16 %v150, %v146
    %v191 = vpack.c.b16 %v151, %v147
    %v192 = vpack.c.b16 %v156, %v152
    %v193 = vpack.c.b16 %v157, %v153
    %v194 = vpack.c.b16 %v158, %v154
    %v195 = vpack.c.b16 %v159, %v155
    %v196 = vpack.c.b16 %v164, %v160
    %v197 = vpack.c.b16 %v165, %v161
    %v198 = vpack.c.b16 %v166, %v162
    %v199 = vpack.c.b16 %v167, %v163
    %232 = vmatpush.bf16.msra.mxu0 %v196
    %233 = vmatpush.bf16.msra.mxu0 %v192
    %234 = vmatpush.bf16.msra.mxu0 %v188
    %235 = vmatpush.bf16.msra.mxu0 %v184
    %236 = vmatpush.bf16.msra.mxu0 %v180
    %237 = vmatpush.bf16.msra.mxu0 %v176
    %238 = vmatpush.bf16.msra.mxu0 %v172
    %239 = vmatpush.bf16.msra.mxu0 %v168
    %240 = vmatmul.bf16.gmra.mxu0 %v29
    %v241 = vpop.f32.mrf.mxu0
    %v242 = vadd.f32 %v64, %v241
    %v243 = vpop.f32.mrf.mxu0
    %244 = vdwg.mxu0
    %245 = vmatpush.bf16.msra.mxu0 %v197
    %246 = vmatpush.bf16.msra.mxu0 %v193
    %247 = vmatpush.bf16.msra.mxu0 %v189
    %248 = vmatpush.bf16.msra.mxu0 %v185
    %249 = vmatpush.bf16.msra.mxu0 %v181
    %250 = vmatpush.bf16.msra.mxu0 %v177
    %251 = vmatpush.bf16.msra.mxu0 %v173
    %252 = vmatpush.bf16.msra.mxu0 %v169
    %253 = vmatmul.bf16.gmra.mxu0 %v29
    %v254 = vpop.f32.mrf.mxu0
    %v255 = vadd.f32 %v65, %v254
    %v256 = vpop.f32.mrf.mxu0
    %257 = vdwg.mxu0
    %258 = vmatpush.bf16.msra.mxu0 %v198
    %259 = vmatpush.bf16.msra.mxu0 %v194
    %260 = vmatpush.bf16.msra.mxu0 %v190
    %261 = vmatpush.bf16.msra.mxu0 %v186
    %262 = vmatpush.bf16.msra.mxu0 %v182
    %263 = vmatpush.bf16.msra.mxu0 %v178
    %264 = vmatpush.bf16.msra.mxu0 %v174
    %265 = vmatpush.bf16.msra.mxu0 %v170
    %266 = vmatmul.bf16.gmra.mxu0 %v29
    %v267 = vpop.f32.mrf.mxu0
    %v268 = vadd.f32 %v66, %v267
    %v269 = vpop.f32.mrf.mxu0
    %270 = vdwg.mxu0
    %271 = vmatpush.bf16.msra.mxu0 %v199
    %272 = vmatpush.bf16.msra.mxu0 %v195
    %273 = vmatpush.bf16.msra.mxu0 %v191
    %274 = vmatpush.bf16.msra.mxu0 %v187
    %275 = vmatpush.bf16.msra.mxu0 %v183
    %276 = vmatpush.bf16.msra.mxu0 %v179
    %277 = vmatpush.bf16.msra.mxu0 %v175
    %278 = vmatpush.bf16.msra.mxu0 %v171
    %279 = vmatmul.bf16.gmra.mxu0 %v29
    %v280 = vpop.f32.mrf.mxu0
    %v281 = vadd.f32 %v67, %v280
    %v282 = vpop.f32.mrf.mxu0
    %283 = vdwg.mxu0
    %v284 = vmul.f32 %v242, 0.5
    %v285 = vmul.f32 %v255, 0.5
    %v286 = vmul.f32 %v268, 0.5
    %v287 = vmul.f32 %v281, 0.5
    %v288 = vtanh.pop %v284
    %v289 = vtanh.pop %v285
    %v290 = vtanh.pop %v286
    %v291 = vtanh.pop %v287
    %v292 = vmul.f32 %v288, 0.5
    %v293 = vmul.f32 %v289, 0.5
    %v294 = vmul.f32 %v290, 0.5
    %v295 = vmul.f32 %v291, 0.5
    %v296 = vadd.f32 %v292, 0.5
    %v297 = vadd.f32 %v293, 0.5
    %v298 = vadd.f32 %v294, 0.5
    %v299 = vadd.f32 %v295, 0.5
    %v300 = vpack.c.bf16 %v296, %v296
    %v301 = vpack.c.bf16 %v297, %v297
    %v302 = vpack.c.bf16 %v298, %v298
    %v303 = vpack.c.bf16 %v299, %v299
    %v304 = vld [vmem:[%s3] sm:$0xff]
    %v305 = vld [vmem:[%s3 + $0x8] sm:$0xf]
    %v306 = vld [vmem:[%s3 + $0xc] sm:$0xff]
    %v307 = vld [vmem:[%s3 + $0x14] sm:$0xf]
    %v308 = vld [vmem:[%s3 + $0x18] sm:$0xff]
    %v309 = vld [vmem:[%s3 + $0x20] sm:$0xf]
    %v310 = vld [vmem:[%s3 + $0x24] sm:$0xff]
    %v311 = vld [vmem:[%s3 + $0x2c] sm:$0xf]
    %v312 = vld [vmem:[%s3 + $0x30] sm:$0xff]
    %v313 = vld [vmem:[%s3 + $0x38] sm:$0xf]
    %v314 = vld [vmem:[%s3 + $0x3c] sm:$0xff]
    %v315 = vld [vmem:[%s3 + $0x44] sm:$0xf]
    %v316 = vld [vmem:[%s3 + $0x48] sm:$0xff]
    %v317 = vld [vmem:[%s3 + $0x50] sm:$0xf]
    %v318 = vld [vmem:[%s3 + $0x54] sm:$0xff]
    %v319 = vld [vmem:[%s3 + $0x5c] sm:$0xf]
    %v320 = vld [vmem:[%s3 + $0x60] sm:$0xff]
    %v321 = vld [vmem:[%s3 + $0x68] sm:$0xf]
    %v322 = vld [vmem:[%s3 + $0x6c] sm:$0xff]
    %v323 = vld [vmem:[%s3 + $0x74] sm:$0xf]
    %v324 = vld [vmem:[%s3 + $0x78] sm:$0xff]
    %v325 = vld [vmem:[%s3 + $0x80] sm:$0xf]
    %v326 = vld [vmem:[%s3 + $0x84] sm:$0xff]
    %v327 = vld [vmem:[%s3 + $0x8c] sm:$0xf]
    %v328 = vld [vmem:[%s3 + $0x90] sm:$0xff]
    %v329 = vld [vmem:[%s3 + $0x98] sm:$0xf]
    %v330 = vld [vmem:[%s3 + $0x9c] sm:$0xff]
    %v331 = vld [vmem:[%s3 + $0xa4] sm:$0xf]
    %v332 = vld [vmem:[%s3 + $0xa8] sm:$0xff]
    %v333 = vld [vmem:[%s3 + $0xb0] sm:$0xf]
    %v334 = vld [vmem:[%s3 + $0xb4] sm:$0xff]
    %v335 = vld [vmem:[%s3 + $0xbc] sm:$0xf]
    %v336 = vld [vmem:[%s3 + $0xc0] sm:$0xff]
    %v337 = vld [vmem:[%s3 + $0xc8] sm:$0xf]
    %v338 = vld [vmem:[%s3 + $0xcc] sm:$0xff]
    %v339 = vld [vmem:[%s3 + $0xd4] sm:$0xf]
    %v340 = vld [vmem:[%s3 + $0xd8] sm:$0xff]
    %v341 = vld [vmem:[%s3 + $0xe0] sm:$0xf]
    %v342 = vld [vmem:[%s3 + $0xe4] sm:$0xff]
    %v343 = vld [vmem:[%s3 + $0xec] sm:$0xf]
    %v344 = vld [vmem:[%s3 + $0xf0] sm:$0xff]
    %v345 = vld [vmem:[%s3 + $0xf8] sm:$0xf]
    %v346 = vld [vmem:[%s3 + $0xfc] sm:$0xff]
    %v347 = vld [vmem:[%s3 + $0x104] sm:$0xf]
    %v348 = vld [vmem:[%s3 + $0x108] sm:$0xff]
    %v349 = vld [vmem:[%s3 + $0x110] sm:$0xf]
    %v350 = vld [vmem:[%s3 + $0x114] sm:$0xff]
    %v351 = vld [vmem:[%s3 + $0x11c] sm:$0xf]
    %v352 = vld [vmem:[%s3 + $0x120] sm:$0xff]
    %v353 = vld [vmem:[%s3 + $0x128] sm:$0xf]
    %v354 = vld [vmem:[%s3 + $0x12c] sm:$0xff]
    %v355 = vld [vmem:[%s3 + $0x134] sm:$0xf]
    %v356 = vld [vmem:[%s3 + $0x138] sm:$0xff]
    %v357 = vld [vmem:[%s3 + $0x140] sm:$0xf]
    %v358 = vld [vmem:[%s3 + $0x144] sm:$0xff]
    %v359 = vld [vmem:[%s3 + $0x14c] sm:$0xf]
    %v360 = vld [vmem:[%s3 + $0x150] sm:$0xff]
    %v361 = vld [vmem:[%s3 + $0x158] sm:$0xf]
    %v362 = vld [vmem:[%s3 + $0x15c] sm:$0xff]
    %v363 = vld [vmem:[%s3 + $0x164] sm:$0xf]
    %v364 = vld [vmem:[%s3 + $0x168] sm:$0xff]
    %v365 = vld [vmem:[%s3 + $0x170] sm:$0xf]
    %v366 = vld [vmem:[%s3 + $0x174] sm:$0xff]
    %v367 = vld [vmem:[%s3 + $0x17c] sm:$0xf]
    %v368 = vld [vmem:[%s3 + $0x180] sm:$0xff]
    %v369 = vld [vmem:[%s3 + $0x188] sm:$0xf]
    %v370 = vld [vmem:[%s3 + $0x18c] sm:$0xff]
    %v371 = vld [vmem:[%s3 + $0x194] sm:$0xf]
    %v372 = vld [vmem:[%s3 + $0x198] sm:$0xff]
    %v373 = vld [vmem:[%s3 + $0x1a0] sm:$0xf]
    %v374 = vld [vmem:[%s3 + $0x1a4] sm:$0xff]
    %v375 = vld [vmem:[%s3 + $0x1ac] sm:$0xf]
    %v376 = vld [vmem:[%s3 + $0x1b0] sm:$0xff]
    %v377 = vld [vmem:[%s3 + $0x1b8] sm:$0xf]
    %v378 = vld [vmem:[%s3 + $0x1bc] sm:$0xff]
    %v379 = vld [vmem:[%s3 + $0x1c4] sm:$0xf]
    %v380 = vld [vmem:[%s3 + $0x1c8] sm:$0xff]
    %v381 = vld [vmem:[%s3 + $0x1d0] sm:$0xf]
    %v382 = vld [vmem:[%s3 + $0x1d4] sm:$0xff]
    %v383 = vld [vmem:[%s3 + $0x1dc] sm:$0xf]
    %v384 = vld [vmem:[%s3 + $0x1e0] sm:$0xff]
    %v385 = vld [vmem:[%s3 + $0x1e8] sm:$0xf]
    %v386 = vld [vmem:[%s3 + $0x1ec] sm:$0xff]
    %v387 = vld [vmem:[%s3 + $0x1f4] sm:$0xf]
    %v388 = vld [vmem:[%s3 + $0x1f8] sm:$0xff]
    %v389 = vld [vmem:[%s3 + $0x200] sm:$0xf]
    %v390 = vld [vmem:[%s3 + $0x204] sm:$0xff]
    %v391 = vld [vmem:[%s3 + $0x20c] sm:$0xf]
    %v392 = vld [vmem:[%s3 + $0x210] sm:$0xff]
    %v393 = vld [vmem:[%s3 + $0x218] sm:$0xf]
    %v394 = vld [vmem:[%s3 + $0x21c] sm:$0xff]
    %v395 = vld [vmem:[%s3 + $0x224] sm:$0xf]
    %v396 = vld [vmem:[%s3 + $0x228] sm:$0xff]
    %v397 = vld [vmem:[%s3 + $0x230] sm:$0xf]
    %v398 = vld [vmem:[%s3 + $0x234] sm:$0xff]
    %v399 = vld [vmem:[%s3 + $0x23c] sm:$0xf]
    %v400 = vld [vmem:[%s3 + $0x240] sm:$0xff]
    %v401 = vld [vmem:[%s3 + $0x248] sm:$0xf]
    %v402 = vld [vmem:[%s3 + $0x24c] sm:$0xff]
    %v403 = vld [vmem:[%s3 + $0x254] sm:$0xf]
    %v404 = vld [vmem:[%s3 + $0x258] sm:$0xff]
    %v405 = vld [vmem:[%s3 + $0x260] sm:$0xf]
    %v406 = vld [vmem:[%s3 + $0x264] sm:$0xff]
    %v407 = vld [vmem:[%s3 + $0x26c] sm:$0xf]
    %v408 = vld [vmem:[%s3 + $0x270] sm:$0xff]
    %v409 = vld [vmem:[%s3 + $0x278] sm:$0xf]
    %v410 = vld [vmem:[%s3 + $0x27c] sm:$0xff]
    %v411 = vld [vmem:[%s3 + $0x284] sm:$0xf]
    %v412 = vld [vmem:[%s3 + $0x288] sm:$0xff]
    %v413 = vld [vmem:[%s3 + $0x290] sm:$0xf]
    %v414 = vld [vmem:[%s3 + $0x294] sm:$0xff]
    %v415 = vld [vmem:[%s3 + $0x29c] sm:$0xf]
    %v416 = vld [vmem:[%s4] sm:$0x7]
    %v418 = vperm.slane %v416, 0
    %v419 = vperm.slane %v416, 1
    %v420 = vperm.slane %v416, 2
    %v536 = vunpack.c.l.b16 %v304
    %v537 = vunpack.c.h.b16 %v304
    %v538 = vunpack.c.l.b16 %v305
    %v539 = vunpack.c.l.b16 %v306
    %v540 = vunpack.c.h.b16 %v306
    %v541 = vunpack.c.l.b16 %v307
    %v542 = vunpack.c.l.b16 %v308
    %v543 = vunpack.c.h.b16 %v308
    %v544 = vunpack.c.l.b16 %v309
    %v545 = vunpack.c.l.b16 %v310
    %v546 = vunpack.c.h.b16 %v310
    %v547 = vunpack.c.l.b16 %v311
    %v548 = vunpack.c.l.b16 %v312
    %v549 = vunpack.c.h.b16 %v312
    %v550 = vunpack.c.l.b16 %v313
    %v551 = vunpack.c.l.b16 %v314
    %v552 = vunpack.c.h.b16 %v314
    %v553 = vunpack.c.l.b16 %v315
    %v554 = vunpack.c.l.b16 %v316
    %v555 = vunpack.c.h.b16 %v316
    %v556 = vunpack.c.l.b16 %v317
    %v557 = vunpack.c.l.b16 %v318
    %v558 = vunpack.c.h.b16 %v318
    %v559 = vunpack.c.l.b16 %v319
    %v560 = vunpack.c.l.b16 %v320
    %v561 = vunpack.c.h.b16 %v320
    %v562 = vunpack.c.l.b16 %v321
    %v563 = vunpack.c.l.b16 %v322
    %v564 = vunpack.c.h.b16 %v322
    %v565 = vunpack.c.l.b16 %v323
    %v566 = vunpack.c.l.b16 %v324
    %v567 = vunpack.c.h.b16 %v324
    %v568 = vunpack.c.l.b16 %v325
    %v569 = vunpack.c.l.b16 %v326
    %v570 = vunpack.c.h.b16 %v326
    %v571 = vunpack.c.l.b16 %v327
    %v572 = vunpack.c.l.b16 %v328
    %v573 = vunpack.c.h.b16 %v328
    %v574 = vunpack.c.l.b16 %v329
    %v575 = vunpack.c.l.b16 %v330
    %v576 = vunpack.c.h.b16 %v330
    %v577 = vunpack.c.l.b16 %v331
    %v578 = vunpack.c.l.b16 %v332
    %v579 = vunpack.c.h.b16 %v332
    %v580 = vunpack.c.l.b16 %v333
    %v581 = vunpack.c.l.b16 %v334
    %v582 = vunpack.c.h.b16 %v334
    %v583 = vunpack.c.l.b16 %v335
    %v584 = vunpack.c.l.b16 %v336
    %v585 = vunpack.c.h.b16 %v336
    %v586 = vunpack.c.l.b16 %v337
    %v587 = vunpack.c.l.b16 %v338
    %v588 = vunpack.c.h.b16 %v338
    %v589 = vunpack.c.l.b16 %v339
    %v590 = vunpack.c.l.b16 %v340
    %v591 = vunpack.c.h.b16 %v340
    %v592 = vunpack.c.l.b16 %v341
    %v593 = vunpack.c.l.b16 %v342
    %v594 = vunpack.c.h.b16 %v342
    %v595 = vunpack.c.l.b16 %v343
    %v596 = vunpack.c.l.b16 %v344
    %v597 = vunpack.c.h.b16 %v344
    %v598 = vunpack.c.l.b16 %v345
    %v599 = vunpack.c.l.b16 %v346
    %v600 = vunpack.c.h.b16 %v346
    %v601 = vunpack.c.l.b16 %v347
    %v602 = vunpack.c.l.b16 %v348
    %v603 = vunpack.c.h.b16 %v348
    %v604 = vunpack.c.l.b16 %v349
    %v605 = vunpack.c.l.b16 %v350
    %v606 = vunpack.c.h.b16 %v350
    %v607 = vunpack.c.l.b16 %v351
    %v608 = vunpack.c.l.b16 %v352
    %v609 = vunpack.c.h.b16 %v352
    %v610 = vunpack.c.l.b16 %v353
    %v611 = vunpack.c.l.b16 %v354
    %v612 = vunpack.c.h.b16 %v354
    %v613 = vunpack.c.l.b16 %v355
    %v614 = vunpack.c.l.b16 %v356
    %v615 = vunpack.c.h.b16 %v356
    %v616 = vunpack.c.l.b16 %v357
    %v617 = vunpack.c.l.b16 %v358
    %v618 = vunpack.c.h.b16 %v358
    %v619 = vunpack.c.l.b16 %v359
    %v620 = vunpack.c.l.b16 %v360
    %v621 = vunpack.c.h.b16 %v360
    %v622 = vunpack.c.l.b16 %v361
    %v623 = vunpack.c.l.b16 %v362
    %v624 = vunpack.c.h.b16 %v362
    %v625 = vunpack.c.l.b16 %v363
    %v626 = vunpack.c.l.b16 %v364
    %v627 = vunpack.c.h.b16 %v364
    %v628 = vunpack.c.l.b16 %v365
    %v629 = vunpack.c.l.b16 %v366
    %v630 = vunpack.c.h.b16 %v366
    %v631 = vunpack.c.l.b16 %v367
    %v632 = vunpack.c.l.b16 %v368
    %v633 = vunpack.c.h.b16 %v368
    %v634 = vunpack.c.l.b16 %v369
    %v635 = vunpack.c.l.b16 %v370
    %v636 = vunpack.c.h.b16 %v370
    %v637 = vunpack.c.l.b16 %v371
    %v638 = vunpack.c.l.b16 %v372
    %v639 = vunpack.c.h.b16 %v372
    %v640 = vunpack.c.l.b16 %v373
    %v641 = vunpack.c.l.b16 %v374
    %v642 = vunpack.c.h.b16 %v374
    %v643 = vunpack.c.l.b16 %v375
    %v644 = vunpack.c.l.b16 %v376
    %v645 = vunpack.c.h.b16 %v376
    %v646 = vunpack.c.l.b16 %v377
    %v647 = vunpack.c.l.b16 %v378
    %v648 = vunpack.c.h.b16 %v378
    %v649 = vunpack.c.l.b16 %v379
    %v650 = vunpack.c.l.b16 %v380
    %v651 = vunpack.c.h.b16 %v380
    %v652 = vunpack.c.l.b16 %v381
    %v653 = vunpack.c.l.b16 %v382
    %v654 = vunpack.c.h.b16 %v382
    %v655 = vunpack.c.l.b16 %v383
    %v656 = vunpack.c.l.b16 %v384
    %v657 = vunpack.c.h.b16 %v384
    %v658 = vunpack.c.l.b16 %v385
    %v659 = vunpack.c.l.b16 %v386
    %v660 = vunpack.c.h.b16 %v386
    %v661 = vunpack.c.l.b16 %v387
    %v662 = vunpack.c.l.b16 %v388
    %v663 = vunpack.c.h.b16 %v388
    %v664 = vunpack.c.l.b16 %v389
    %v665 = vunpack.c.l.b16 %v390
    %v666 = vunpack.c.h.b16 %v390
    %v667 = vunpack.c.l.b16 %v391
    %v668 = vunpack.c.l.b16 %v392
    %v669 = vunpack.c.h.b16 %v392
    %v670 = vunpack.c.l.b16 %v393
    %v671 = vunpack.c.l.b16 %v394
    %v672 = vunpack.c.h.b16 %v394
    %v673 = vunpack.c.l.b16 %v395
    %v674 = vunpack.c.l.b16 %v396
    %v675 = vunpack.c.h.b16 %v396
    %v676 = vunpack.c.l.b16 %v397
    %v677 = vunpack.c.l.b16 %v398
    %v678 = vunpack.c.h.b16 %v398
    %v679 = vunpack.c.l.b16 %v399
    %v680 = vunpack.c.l.b16 %v400
    %v681 = vunpack.c.h.b16 %v400
    %v682 = vunpack.c.l.b16 %v401
    %v683 = vunpack.c.l.b16 %v402
    %v684 = vunpack.c.h.b16 %v402
    %v685 = vunpack.c.l.b16 %v403
    %v686 = vunpack.c.l.b16 %v404
    %v687 = vunpack.c.h.b16 %v404
    %v688 = vunpack.c.l.b16 %v405
    %v689 = vunpack.c.l.b16 %v406
    %v690 = vunpack.c.h.b16 %v406
    %v691 = vunpack.c.l.b16 %v407
    %v692 = vunpack.c.l.b16 %v408
    %v693 = vunpack.c.h.b16 %v408
    %v694 = vunpack.c.l.b16 %v409
    %v695 = vunpack.c.l.b16 %v410
    %v696 = vunpack.c.h.b16 %v410
    %v697 = vunpack.c.l.b16 %v411
    %v698 = vunpack.c.l.b16 %v412
    %v699 = vunpack.c.h.b16 %v412
    %v700 = vunpack.c.l.b16 %v413
    %v701 = vunpack.c.l.b16 %v414
    %v702 = vunpack.c.h.b16 %v414
    %v703 = vunpack.c.l.b16 %v415
    %v704 = vpack.c.b16 %v539, %v536
    %v705 = vpack.c.b16 %v540, %v537
    %v706 = vpack.c.b16 %v541, %v538
    %v707 = vpack.c.b16 %v545, %v542
    %v708 = vpack.c.b16 %v546, %v543
    %v709 = vpack.c.b16 %v547, %v544
    %v710 = vpack.c.b16 %v551, %v548
    %v711 = vpack.c.b16 %v552, %v549
    %v712 = vpack.c.b16 %v553, %v550
    %v713 = vpack.c.b16 %v557, %v554
    %v714 = vpack.c.b16 %v558, %v555
    %v715 = vpack.c.b16 %v559, %v556
    %v716 = vpack.c.b16 %v563, %v560
    %v717 = vpack.c.b16 %v564, %v561
    %v718 = vpack.c.b16 %v565, %v562
    %v719 = vpack.c.b16 %v569, %v566
    %v720 = vpack.c.b16 %v570, %v567
    %v721 = vpack.c.b16 %v571, %v568
    %v722 = vpack.c.b16 %v575, %v572
    %v723 = vpack.c.b16 %v576, %v573
    %v724 = vpack.c.b16 %v577, %v574
    %v725 = vpack.c.b16 %v581, %v578
    %v726 = vpack.c.b16 %v582, %v579
    %v727 = vpack.c.b16 %v583, %v580
    %v728 = vpack.c.b16 %v587, %v584
    %v729 = vpack.c.b16 %v588, %v585
    %v730 = vpack.c.b16 %v589, %v586
    %v731 = vpack.c.b16 %v593, %v590
    %v732 = vpack.c.b16 %v594, %v591
    %v733 = vpack.c.b16 %v595, %v592
    %v734 = vpack.c.b16 %v599, %v596
    %v735 = vpack.c.b16 %v600, %v597
    %v736 = vpack.c.b16 %v601, %v598
    %v737 = vpack.c.b16 %v605, %v602
    %v738 = vpack.c.b16 %v606, %v603
    %v739 = vpack.c.b16 %v607, %v604
    %v740 = vpack.c.b16 %v611, %v608
    %v741 = vpack.c.b16 %v612, %v609
    %v742 = vpack.c.b16 %v613, %v610
    %v743 = vpack.c.b16 %v617, %v614
    %v744 = vpack.c.b16 %v618, %v615
    %v745 = vpack.c.b16 %v619, %v616
    %v746 = vpack.c.b16 %v623, %v620
    %v747 = vpack.c.b16 %v624, %v621
    %v748 = vpack.c.b16 %v625, %v622
    %v749 = vpack.c.b16 %v629, %v626
    %v750 = vpack.c.b16 %v630, %v627
    %v751 = vpack.c.b16 %v631, %v628
    %v752 = vpack.c.b16 %v635, %v632
    %v753 = vpack.c.b16 %v636, %v633
    %v754 = vpack.c.b16 %v637, %v634
    %v755 = vpack.c.b16 %v641, %v638
    %v756 = vpack.c.b16 %v642, %v639
    %v757 = vpack.c.b16 %v643, %v640
    %v758 = vpack.c.b16 %v647, %v644
    %v759 = vpack.c.b16 %v648, %v645
    %v760 = vpack.c.b16 %v649, %v646
    %v761 = vpack.c.b16 %v653, %v650
    %v762 = vpack.c.b16 %v654, %v651
    %v763 = vpack.c.b16 %v655, %v652
    %v764 = vpack.c.b16 %v659, %v656
    %v765 = vpack.c.b16 %v660, %v657
    %v766 = vpack.c.b16 %v661, %v658
    %v767 = vpack.c.b16 %v665, %v662
    %v768 = vpack.c.b16 %v666, %v663
    %v769 = vpack.c.b16 %v667, %v664
    %v770 = vpack.c.b16 %v671, %v668
    %v771 = vpack.c.b16 %v672, %v669
    %v772 = vpack.c.b16 %v673, %v670
    %v773 = vpack.c.b16 %v677, %v674
    %v774 = vpack.c.b16 %v678, %v675
    %v775 = vpack.c.b16 %v679, %v676
    %v776 = vpack.c.b16 %v683, %v680
    %v777 = vpack.c.b16 %v684, %v681
    %v778 = vpack.c.b16 %v685, %v682
    %v779 = vpack.c.b16 %v689, %v686
    %v780 = vpack.c.b16 %v690, %v687
    %v781 = vpack.c.b16 %v691, %v688
    %v782 = vpack.c.b16 %v695, %v692
    %v783 = vpack.c.b16 %v696, %v693
    %v784 = vpack.c.b16 %v697, %v694
    %v785 = vpack.c.b16 %v701, %v698
    %v786 = vpack.c.b16 %v702, %v699
    %v787 = vpack.c.b16 %v703, %v700
    %vm872 = vcmask 523264
    %v874 = vsel %vm872, %v303, 0
    %876 = vmatpush.bf16.msra.mxu0 %v725
    %877 = vmatpush.bf16.msra.mxu0 %v722
    %878 = vmatpush.bf16.msra.mxu0 %v719
    %879 = vmatpush.bf16.msra.mxu0 %v716
    %880 = vmatpush.bf16.msra.mxu0 %v713
    %881 = vmatpush.bf16.msra.mxu0 %v710
    %882 = vmatpush.bf16.msra.mxu0 %v707
    %883 = vmatpush.bf16.msra.mxu0 %v704
    %884 = vmatmul.bf16.gmra.mxu0 %v300
    %v885 = vpop.f32.mrf.mxu0
    %v886 = vadd.f32 %v418, %v885
    %v887 = vpop.f32.mrf.mxu0
    %888 = vdwg.mxu0
    %889 = vmatpush.bf16.msra.mxu0 %v749
    %890 = vmatpush.bf16.msra.mxu0 %v746
    %891 = vmatpush.bf16.msra.mxu0 %v743
    %892 = vmatpush.bf16.msra.mxu0 %v740
    %893 = vmatpush.bf16.msra.mxu0 %v737
    %894 = vmatpush.bf16.msra.mxu0 %v734
    %895 = vmatpush.bf16.msra.mxu0 %v731
    %896 = vmatpush.bf16.msra.mxu0 %v728
    %897 = vmatmul.bf16.gmra.mxu0 %v301
    %v898 = vpop.f32.mrf.mxu0
    %v899 = vadd.f32 %v886, %v898
    %v900 = vpop.f32.mrf.mxu0
    %901 = vdwg.mxu0
    %902 = vmatpush.bf16.msra.mxu0 %v773
    %903 = vmatpush.bf16.msra.mxu0 %v770
    %904 = vmatpush.bf16.msra.mxu0 %v767
    %905 = vmatpush.bf16.msra.mxu0 %v764
    %906 = vmatpush.bf16.msra.mxu0 %v761
    %907 = vmatpush.bf16.msra.mxu0 %v758
    %908 = vmatpush.bf16.msra.mxu0 %v755
    %909 = vmatpush.bf16.msra.mxu0 %v752
    %910 = vmatmul.bf16.gmra.mxu0 %v302
    %v911 = vpop.f32.mrf.mxu0
    %v912 = vadd.f32 %v899, %v911
    %v913 = vpop.f32.mrf.mxu0
    %914 = vdwg.mxu0
    %915 = vmatpush.bf16.msra.mxu0 0
    %916 = vmatpush.bf16.msra.mxu0 0
    %917 = vmatpush.bf16.msra.mxu0 0
    %918 = vmatpush.bf16.msra.mxu0 0
    %919 = vmatpush.bf16.msra.mxu0 %v785
    %920 = vmatpush.bf16.msra.mxu0 %v782
    %921 = vmatpush.bf16.msra.mxu0 %v779
    %922 = vmatpush.bf16.msra.mxu0 %v776
    %923 = vmatmul.bf16.gmra.mxu0 %v874
    %v924 = vpop.f32.mrf.mxu0
    %v925 = vadd.f32 %v912, %v924
    %v926 = vpop.f32.mrf.mxu0
    %927 = vdwg.mxu0
    %928 = vmatpush.bf16.msra.mxu0 %v726
    %929 = vmatpush.bf16.msra.mxu0 %v723
    %930 = vmatpush.bf16.msra.mxu0 %v720
    %931 = vmatpush.bf16.msra.mxu0 %v717
    %932 = vmatpush.bf16.msra.mxu0 %v714
    %933 = vmatpush.bf16.msra.mxu0 %v711
    %934 = vmatpush.bf16.msra.mxu0 %v708
    %935 = vmatpush.bf16.msra.mxu0 %v705
    %936 = vmatmul.bf16.gmra.mxu0 %v300
    %v937 = vpop.f32.mrf.mxu0
    %v938 = vadd.f32 %v419, %v937
    %v939 = vpop.f32.mrf.mxu0
    %940 = vdwg.mxu0
    %941 = vmatpush.bf16.msra.mxu0 %v750
    %942 = vmatpush.bf16.msra.mxu0 %v747
    %943 = vmatpush.bf16.msra.mxu0 %v744
    %944 = vmatpush.bf16.msra.mxu0 %v741
    %945 = vmatpush.bf16.msra.mxu0 %v738
    %946 = vmatpush.bf16.msra.mxu0 %v735
    %947 = vmatpush.bf16.msra.mxu0 %v732
    %948 = vmatpush.bf16.msra.mxu0 %v729
    %949 = vmatmul.bf16.gmra.mxu0 %v301
    %v950 = vpop.f32.mrf.mxu0
    %v951 = vadd.f32 %v938, %v950
    %v952 = vpop.f32.mrf.mxu0
    %953 = vdwg.mxu0
    %954 = vmatpush.bf16.msra.mxu0 %v774
    %955 = vmatpush.bf16.msra.mxu0 %v771
    %956 = vmatpush.bf16.msra.mxu0 %v768
    %957 = vmatpush.bf16.msra.mxu0 %v765
    %958 = vmatpush.bf16.msra.mxu0 %v762
    %959 = vmatpush.bf16.msra.mxu0 %v759
    %960 = vmatpush.bf16.msra.mxu0 %v756
    %961 = vmatpush.bf16.msra.mxu0 %v753
    %962 = vmatmul.bf16.gmra.mxu0 %v302
    %v963 = vpop.f32.mrf.mxu0
    %v964 = vadd.f32 %v951, %v963
    %v965 = vpop.f32.mrf.mxu0
    %966 = vdwg.mxu0
    %967 = vmatpush.bf16.msra.mxu0 0
    %968 = vmatpush.bf16.msra.mxu0 0
    %969 = vmatpush.bf16.msra.mxu0 0
    %970 = vmatpush.bf16.msra.mxu0 0
    %971 = vmatpush.bf16.msra.mxu0 %v786
    %972 = vmatpush.bf16.msra.mxu0 %v783
    %973 = vmatpush.bf16.msra.mxu0 %v780
    %974 = vmatpush.bf16.msra.mxu0 %v777
    %975 = vmatmul.bf16.gmra.mxu0 %v874
    %v976 = vpop.f32.mrf.mxu0
    %v977 = vadd.f32 %v964, %v976
    %v978 = vpop.f32.mrf.mxu0
    %979 = vdwg.mxu0
    %980 = vmatpush.bf16.msra.mxu0 %v727
    %981 = vmatpush.bf16.msra.mxu0 %v724
    %982 = vmatpush.bf16.msra.mxu0 %v721
    %983 = vmatpush.bf16.msra.mxu0 %v718
    %984 = vmatpush.bf16.msra.mxu0 %v715
    %985 = vmatpush.bf16.msra.mxu0 %v712
    %986 = vmatpush.bf16.msra.mxu0 %v709
    %987 = vmatpush.bf16.msra.mxu0 %v706
    %988 = vmatmul.bf16.gmra.mxu0 %v300
    %v989 = vpop.f32.mrf.mxu0
    %v990 = vadd.f32 %v420, %v989
    %v991 = vpop.f32.mrf.mxu0
    %992 = vdwg.mxu0
    %993 = vmatpush.bf16.msra.mxu0 %v751
    %994 = vmatpush.bf16.msra.mxu0 %v748
    %995 = vmatpush.bf16.msra.mxu0 %v745
    %996 = vmatpush.bf16.msra.mxu0 %v742
    %997 = vmatpush.bf16.msra.mxu0 %v739
    %998 = vmatpush.bf16.msra.mxu0 %v736
    %999 = vmatpush.bf16.msra.mxu0 %v733
    %1000 = vmatpush.bf16.msra.mxu0 %v730
    %1001 = vmatmul.bf16.gmra.mxu0 %v301
    %v1002 = vpop.f32.mrf.mxu0
    %v1003 = vadd.f32 %v990, %v1002
    %v1004 = vpop.f32.mrf.mxu0
    %1005 = vdwg.mxu0
    %1006 = vmatpush.bf16.msra.mxu0 %v775
    %1007 = vmatpush.bf16.msra.mxu0 %v772
    %1008 = vmatpush.bf16.msra.mxu0 %v769
    %1009 = vmatpush.bf16.msra.mxu0 %v766
    %1010 = vmatpush.bf16.msra.mxu0 %v763
    %1011 = vmatpush.bf16.msra.mxu0 %v760
    %1012 = vmatpush.bf16.msra.mxu0 %v757
    %1013 = vmatpush.bf16.msra.mxu0 %v754
    %1014 = vmatmul.bf16.gmra.mxu0 %v302
    %v1015 = vpop.f32.mrf.mxu0
    %v1016 = vadd.f32 %v1003, %v1015
    %v1017 = vpop.f32.mrf.mxu0
    %1018 = vdwg.mxu0
    %1019 = vmatpush.bf16.msra.mxu0 0
    %1020 = vmatpush.bf16.msra.mxu0 0
    %1021 = vmatpush.bf16.msra.mxu0 0
    %1022 = vmatpush.bf16.msra.mxu0 0
    %1023 = vmatpush.bf16.msra.mxu0 %v787
    %1024 = vmatpush.bf16.msra.mxu0 %v784
    %1025 = vmatpush.bf16.msra.mxu0 %v781
    %1026 = vmatpush.bf16.msra.mxu0 %v778
    %1027 = vmatmul.bf16.gmra.mxu0 %v874
    %v1028 = vpop.f32.mrf.mxu0
    %v1029 = vadd.f32 %v1016, %v1028
    %v1030 = vpop.f32.mrf.mxu0
    %1031 = vdwg.mxu0
    %v1032 = vmul.f32 %v925, 0.5
    %v1033 = vmul.f32 %v977, 0.5
    %v1034 = vmul.f32 %v1029, 0.5
    %v1035 = vtanh.pop %v1032
    %v1036 = vtanh.pop %v1033
    %v1037 = vtanh.pop %v1034
    %v1038 = vmul.f32 %v1035, 0.5
    %v1039 = vmul.f32 %v1036, 0.5
    %v1040 = vmul.f32 %v1037, 0.5
    %v1041 = vadd.f32 %v1038, 0.5
    %v1042 = vadd.f32 %v1039, 0.5
    %v1043 = vadd.f32 %v1040, 0.5
    %v1044 = vld [vmem:[%s5] sm:$0xff]
    %v1045 = vld [vmem:[%s5 + $0x8] sm:$0xff]
    %v1046 = vld [vmem:[%s5 + $0x10] sm:$0xff]
    %v1047 = vld [vmem:[%s5 + $0x18] sm:$0xff]
    %v1048 = vld [vmem:[%s5 + $0x20] sm:$0xff]
    %v1049 = vld [vmem:[%s5 + $0x28] sm:$0xff]
    %v1050 = vld [vmem:[%s5 + $0x30] sm:$0xff]
    %v1051 = vld [vmem:[%s5 + $0x38] sm:$0xff]
    %v1052 = vld [vmem:[%s5 + $0x40] sm:$0xff]
    %v1053 = vld [vmem:[%s5 + $0x48] sm:$0xff]
    %v1054 = vld [vmem:[%s5 + $0x50] sm:$0xff]
    %v1055 = vld [vmem:[%s5 + $0x58] sm:$0xff]
    %v1056 = vld [vmem:[%s5 + $0x60] sm:$0xff]
    %v1057 = vld [vmem:[%s5 + $0x68] sm:$0xff]
    %v1058 = vld [vmem:[%s5 + $0x70] sm:$0xff]
    %v1059 = vld [vmem:[%s5 + $0x78] sm:$0xff]
    %v1060 = vld [vmem:[%s5 + $0x80] sm:$0xff]
    %v1061 = vld [vmem:[%s5 + $0x88] sm:$0xff]
    %v1062 = vld [vmem:[%s5 + $0x90] sm:$0xff]
    %v1063 = vld [vmem:[%s5 + $0x98] sm:$0xff]
    %v1064 = vld [vmem:[%s5 + $0xa0] sm:$0xff]
    %v1065 = vld [vmem:[%s5 + $0xa8] sm:$0xff]
    %v1066 = vld [vmem:[%s5 + $0xb0] sm:$0xff]
    %v1067 = vld [vmem:[%s5 + $0xb8] sm:$0xff]
    %v1068 = vld [vmem:[%s5 + $0xc0] sm:$0xff]
    %v1069 = vld [vmem:[%s5 + $0xc8] sm:$0xff]
    %v1070 = vld [vmem:[%s5 + $0xd0] sm:$0xff]
    %v1071 = vld [vmem:[%s5 + $0xd8] sm:$0xff]
    %v1072 = vld [vmem:[%s5 + $0xe0] sm:$0xff]
    %v1073 = vld [vmem:[%s5 + $0xe8] sm:$0xff]
    %v1074 = vld [vmem:[%s5 + $0xf0] sm:$0xff]
    %v1075 = vld [vmem:[%s5 + $0xf8] sm:$0xff]
    %v1076 = vld [vmem:[%s5 + $0x100] sm:$0xff]
    %v1077 = vld [vmem:[%s5 + $0x108] sm:$0xff]
    %v1078 = vld [vmem:[%s5 + $0x110] sm:$0xff]
    %v1079 = vld [vmem:[%s5 + $0x118] sm:$0xff]
    %v1080 = vld [vmem:[%s5 + $0x120] sm:$0xff]
    %v1081 = vld [vmem:[%s5 + $0x128] sm:$0xff]
    %v1082 = vld [vmem:[%s5 + $0x130] sm:$0xff]
    %v1083 = vld [vmem:[%s5 + $0x138] sm:$0xff]
    %v1084 = vld [vmem:[%s6] sm:$0x1]
    %v1086 = vperm.slane %v1084, 0
    %v1089 = vsel %vm872, %v1043, 0
    %1091 = vmatpush.msra.mxu0 %v1059
    %1092 = vmatpush.msra.mxu0 %v1058
    %1093 = vmatpush.msra.mxu0 %v1057
    %1094 = vmatpush.msra.mxu0 %v1056
    %1095 = vmatpush.msra.mxu0 %v1055
    %1096 = vmatpush.msra.mxu0 %v1054
    %1097 = vmatpush.msra.mxu0 %v1053
    %1098 = vmatpush.msra.mxu0 %v1052
    %1099 = vmatpush.msra.mxu0 %v1051
    %1100 = vmatpush.msra.mxu0 %v1050
    %1101 = vmatpush.msra.mxu0 %v1049
    %1102 = vmatpush.msra.mxu0 %v1048
    %1103 = vmatpush.msra.mxu0 %v1047
    %1104 = vmatpush.msra.mxu0 %v1046
    %1105 = vmatpush.msra.mxu0 %v1045
    %1106 = vmatpush.msra.mxu0 %v1044
    %1107 = vmatmul.f32.gmra.mxu0 %v1041
    %v1108 = vpop.f32.mrf.mxu0
    %v1109 = vadd.f32 %v1086, %v1108
    %1110 = vdwg.mxu0
    %1111 = vmatpush.msra.mxu0 %v1075
    %1112 = vmatpush.msra.mxu0 %v1074
    %1113 = vmatpush.msra.mxu0 %v1073
    %1114 = vmatpush.msra.mxu0 %v1072
    %1115 = vmatpush.msra.mxu0 %v1071
    %1116 = vmatpush.msra.mxu0 %v1070
    %1117 = vmatpush.msra.mxu0 %v1069
    %1118 = vmatpush.msra.mxu0 %v1068
    %1119 = vmatpush.msra.mxu0 %v1067
    %1120 = vmatpush.msra.mxu0 %v1066
    %1121 = vmatpush.msra.mxu0 %v1065
    %1122 = vmatpush.msra.mxu0 %v1064
    %1123 = vmatpush.msra.mxu0 %v1063
    %1124 = vmatpush.msra.mxu0 %v1062
    %1125 = vmatpush.msra.mxu0 %v1061
    %1126 = vmatpush.msra.mxu0 %v1060
    %1127 = vmatmul.f32.gmra.mxu0 %v1042
    %v1128 = vpop.f32.mrf.mxu0
    %v1129 = vadd.f32 %v1109, %v1128
    %1130 = vdwg.mxu0
    %1131 = vmatpush.msra.mxu0 0.0
    %1132 = vmatpush.msra.mxu0 0.0
    %1133 = vmatpush.msra.mxu0 0.0
    %1134 = vmatpush.msra.mxu0 0.0
    %1135 = vmatpush.msra.mxu0 0.0
    %1136 = vmatpush.msra.mxu0 0.0
    %1137 = vmatpush.msra.mxu0 0.0
    %1138 = vmatpush.msra.mxu0 0.0
    %1139 = vmatpush.msra.mxu0 %v1083
    %1140 = vmatpush.msra.mxu0 %v1082
    %1141 = vmatpush.msra.mxu0 %v1081
    %1142 = vmatpush.msra.mxu0 %v1080
    %1143 = vmatpush.msra.mxu0 %v1079
    %1144 = vmatpush.msra.mxu0 %v1078
    %1145 = vmatpush.msra.mxu0 %v1077
    %1146 = vmatpush.msra.mxu0 %v1076
    %1147 = vmatmul.f32.gmra.mxu0 %v1089
    %v1148 = vpop.f32.mrf.mxu0
    %v1149 = vadd.f32 %v1129, %v1148
    %1150 = vdwg.mxu0
    %vm1151 = vcmask 785408
    %1152 = vst.msk [vmem:[#allocation2] sm:$0xff] %vm1151, %v1149
    // Predicated region
    $region30: #{tpu_custom_call.1} parent=1 // pred_check
      _
    $region31: #{tpu_custom_call.1} parent=1 // pred_check_branch
      %1154 = sbr.rel (0) target = $region33
    $region32: #{tpu_custom_call.1} parent=1 // pred_region
      %1156 = vsyncadd [#allocation3], 0
      %s1158 = sshll.u32 [#allocation2], 4
      %s1159 = int_to_ptr.vmem [resolvable:$true] %s1158
      %s1160 = sshll.u32 %s7, 4
      %s1161 = int_to_ptr.hbm [resolvable:$true] %s1160
      %1163 = dma.vmem_to_hbm [thread:$0]  %s1159, 128, %s1161, [#allocation3]
    $region33: #{tpu_custom_call.1} parent=1 // pred_fallthru
      _
    // Predicated region
    $region34: #{tpu_custom_call.1} parent=1 // pred_check
      _
    $region35: #{tpu_custom_call.1} parent=1 // pred_check_branch
      %1165 = sbr.rel (0) target = $region37
    $region36: #{tpu_custom_call.1} parent=1 // pred_region
      %1167 = dma.done [#allocation3], 128
    $region37: #{tpu_custom_call.1} parent=1 // pred_fallthru
      _
    %1168 = vsyncpa [#allocation3], 1

</llo_original>
